<compile_context>
chip_gen: v7x
topology: tpu7x:2x2x1
jax: 0.10.0
libtpu: 0.0.40
codegen_flags: <defaults>
</compile_context>

<pallas_src>
import functools

import jax
import jax.numpy as jnp
import numpy as np
from jax.experimental import pallas as pl
from jax.experimental.pallas import tpu as pltpu

EPS = 1e-10


def _loss_adv_kernel(x1_ref, y1_ref, x2_ref, y2_ref, seg_ref, score_ref,
                     loss_ref, acc_ref, *, th):
    # x1/y1/x2/y2 : (N, 1) int32   VMEM
    # seg_ref     : (C, TH, W) f32 VMEM (logits tile: rows [h*TH, (h+1)*TH))
    # score_ref   : (N, 1) f32     VMEM
    # loss_ref    : (1, 1) f32     SMEM (written on last grid step)
    # acc_ref     : (N, 1) f32     VMEM scratch (per-ROI running sums)
    h = pl.program_id(0)

    @pl.when(h == 0)
    def _init():
        acc_ref[...] = jnp.zeros_like(acc_ref)

    # ---- channel softmax on this spatial tile, keep channel 1 only ----
    seg_blk = seg_ref[...]                                  # (C, TH, W)
    m = jnp.max(seg_blk, axis=0, keepdims=True)             # VPU
    e = jnp.exp(seg_blk - m)                                # EUP
    denom = jnp.sum(e, axis=0)                              # (TH, W)
    inv = pl.reciprocal(denom, approx=True)                 # EUP slot
    inv = inv * (2.0 - denom * inv)                         # one Newton step
    score_tile = e[1] * inv                                 # (TH, W) f32

    x1 = x1_ref[...]
    y1 = y1_ref[...]
    x2 = x2_ref[...]
    y2 = y2_ref[...]                                        # (N, 1) int32
    n = x1.shape[0]
    w = score_tile.shape[1]

    # ---- separable rectangle sum: rows via MXU, cols via lane mask ----
    rows = h * th + jax.lax.broadcasted_iota(jnp.int32, (n, th), 1)   # (N, TH)
    row_mask = ((rows >= y1) & (rows < y2)).astype(jnp.bfloat16)      # exact 0/1

    # hi/lo two-pass split keeps ~f32 accuracy on the bf16 MXU path
    hi = score_tile.astype(jnp.bfloat16)
    lo = (score_tile - hi.astype(jnp.float32)).astype(jnp.bfloat16)
    partial = (jnp.dot(row_mask, hi, preferred_element_type=jnp.float32)
               + jnp.dot(row_mask, lo, preferred_element_type=jnp.float32))  # (N, W)

    cols = jax.lax.broadcasted_iota(jnp.int32, (n, w), 1)   # (N, W)
    col_mask = (cols >= x1) & (cols < x2)
    acc_ref[...] += jnp.sum(jnp.where(col_mask, partial, 0.0),
                            axis=1, keepdims=True)          # (N, 1)

    # ---- finalize: iou, pairwise similarities, MSE loss ----
    @pl.when(h == pl.num_programs(0) - 1)
    def _finalize():
        cnt = ((x2 - x1) * (y2 - y1)).astype(jnp.float32)   # (N, 1)
        iou = acc_ref[...] / cnt                            # (N, 1)
        score = score_ref[...]                              # (N, 1)

        dis_iou = jnp.transpose(iou) - iou                  # (N, N): v[j]-v[i]
        dis_sc = jnp.transpose(score) - score
        sim_iou = jnp.sqrt(dis_iou * dis_iou + EPS)
        sim_sc = jnp.sqrt(dis_sc * dis_sc + EPS)
        d = sim_iou - sim_sc
        loss_ref[0, 0] = jnp.mean(d * d)


def _pick_tile_h(C, H, W, budget_bytes=4 << 20):
    """Largest tile height: whole map if it fits the budget, else a
    multiple-of-8 height whose (C, TH, W) f32 tile fits."""
    if C * H * W * 4 <= budget_bytes:
        return H
    th = (budget_bytes // (C * W * 4)) // 8 * 8
    return int(max(8, min(th, max(8, (H // 8) * 8))))


def loss_adv_pallas(ssw, seg, score, *, tile_h=None):
    """ssw: (1, N, 5) float, seg: (1, C, H, W) float, score: (N,) float."""
    boxes = jnp.squeeze(ssw, axis=0)[:, 1:].astype(jnp.int32)    # (N, 4)
    x1 = boxes[:, 0:1]
    y1 = boxes[:, 1:2]
    x2 = boxes[:, 2:3]
    y2 = boxes[:, 3:4]                                           # (N, 1) each
    _, C, H, W = seg.shape
    seg3 = seg[0].astype(jnp.float32)                            # (C, H, W)
    score_col = jnp.reshape(score, (-1, 1)).astype(jnp.float32)  # (N, 1)
    N = boxes.shape[0]

    TH = int(tile_h) if tile_h is not None else _pick_tile_h(C, H, W)
    if TH < H:
        TH = max(8, (TH // 8) * 8)                 # tiled path: TH multiple of 8
        Hp = ((H + TH - 1) // TH) * TH
        if Hp != H:                                # pad rows; never inside a box
            seg3 = jnp.pad(seg3, ((0, 0), (0, Hp - H), (0, 0)))
    else:
        TH = H                                     # single-step path
        Hp = H
    grid = (Hp // TH,)

    # VMEM budget derived from the actual resident tile (double-buffered seg
    # tile + small operands); safe on v5e/v6e (128 MiB) and v7x (64 MiB).
    tile_bytes = C * TH * W * 4
    vmem_limit = int(min(48 * 2**20, max(16 * 2**20, 4 * tile_bytes + (2 << 20))))

    kernel = functools.partial(_loss_adv_kernel, th=TH)
    loss = pl.pallas_call(
        kernel,
        out_shape=jax.ShapeDtypeStruct((1, 1), jnp.float32),
        grid_spec=pltpu.PrefetchScalarGridSpec(
            num_scalar_prefetch=0,
            grid=grid,
            in_specs=[
                pl.BlockSpec((N, 1), lambda h: (0, 0)),          # x1
                pl.BlockSpec((N, 1), lambda h: (0, 0)),          # y1
                pl.BlockSpec((N, 1), lambda h: (0, 0)),          # x2
                pl.BlockSpec((N, 1), lambda h: (0, 0)),          # y2
                pl.BlockSpec((C, TH, W), lambda h: (0, h, 0)),   # seg tile
                pl.BlockSpec((N, 1), lambda h: (0, 0)),          # score
            ],
            out_specs=pl.BlockSpec((1, 1), lambda h: (0, 0),
                                   memory_space=pltpu.MemorySpace.SMEM),
            scratch_shapes=[pltpu.VMEM((N, 1), jnp.float32)],
        ),
        compiler_params=pltpu.CompilerParams(
            dimension_semantics=("arbitrary",),
            vmem_limit_bytes=vmem_limit,
        ),
    )(x1, y1, x2, y2, seg3, score_col)
    return loss[0, 0]


def loss_adv_reference(ssw, seg, score):
    """Pure numpy/JAX reference mirroring the PyTorch forward."""
    boxes = np.asarray(ssw)[0, :, 1:].astype(np.int16)
    seg_sm = np.asarray(jax.nn.softmax(jnp.asarray(seg), axis=1))
    score_map = seg_sm[0, 1]
    N = boxes.shape[0]
    iou = np.empty(N, np.float64)
    for i in range(N):
        x1, y1, x2, y2 = boxes[i]
        iou[i] = score_map[y1:y2, x1:x2].astype(np.float64).mean()
    iou_e = np.broadcast_to(iou, (N, N))
    dis_iou = iou_e - iou_e.T
    sim_iou = np.sqrt(dis_iou * dis_iou + EPS)
    sc = np.asarray(score, np.float64)
    sc_e = np.broadcast_to(sc, (N, N))
    dis_sc = sc_e - sc_e.T
    sim_sc = np.sqrt(dis_sc * dis_sc + EPS)
    return np.mean((sim_iou - sim_sc) ** 2)


if __name__ == "__main__":
    key = jax.random.PRNGKey(0)
    B, C, H, W = 1, 4, 32, 32
    N = 8  # number of ROIs

    k_seg, k_sc, k_x1, k_y1, k_w, k_h = jax.random.split(key, 6)
    seg = jax.random.normal(k_seg, (B, C, H, W), dtype=jnp.float32)
    score = jax.random.uniform(k_sc, (N,), dtype=jnp.float32)

    # Valid boxes: x1 < x2 <= W, y1 < y2 <= H (some straddle the H tiles)
    x1 = jax.random.randint(k_x1, (N,), 0, W - 8)
    y1 = jax.random.randint(k_y1, (N,), 0, H - 8)
    x2 = x1 + jax.random.randint(k_w, (N,), 2, 9)
    y2 = y1 + jax.random.randint(k_h, (N,), 2, 9)
    # ssw layout: (1, N, 5) with column 0 unused (batch idx), cols 1:5 = box
    ssw = jnp.concatenate(
        [jnp.zeros((N, 1), jnp.float32)]
        + [c.astype(jnp.float32)[:, None] for c in (x1, y1, x2, y2)],
        axis=1,
    )[None]

    ref = loss_adv_reference(ssw, seg, score)

    # Path 1: single-step (whole score map resident in VMEM).
    out_single = jax.block_until_ready(loss_adv_pallas(ssw, seg, score))
    np.testing.assert_allclose(np.asarray(out_single), ref, rtol=1e-3, atol=1e-6)

    # Path 2: forced H tiling (4 grid steps) exercises the accumulator path.
    out_tiled = jax.block_until_ready(loss_adv_pallas(ssw, seg, score, tile_h=8))
    np.testing.assert_allclose(np.asarray(out_tiled), ref, rtol=1e-3, atol=1e-6)

    print("KERNEL_OK")
</pallas_src>

<mosaic_0001>
module attributes {stable_mosaic.version = 11 : i64} {
  func.func @_loss_adv_kernel(%arg0: i32, %arg1: memref<8x1xi32, #tpu.memory_space<vmem>>, %arg2: memref<8x1xi32, #tpu.memory_space<vmem>>, %arg3: memref<8x1xi32, #tpu.memory_space<vmem>>, %arg4: memref<8x1xi32, #tpu.memory_space<vmem>>, %arg5: memref<4x32x32xf32, #tpu.memory_space<vmem>>, %arg6: memref<8x1xf32, #tpu.memory_space<vmem>>, %arg7: memref<1x1xf32, #tpu.memory_space<smem>>, %arg8: memref<8x1xf32, #tpu.memory_space<vmem>>) attributes {dimension_semantics = [#tpu.dimension_semantics<arbitrary>], iteration_bounds = array<i64: 1>, scalar_prefetch = 0 : i64, scratch_operands = 1 : i64, tpu.core_type = #tpu.core_type<tc>, window_params = [{pipeline_mode = #tpu.pipeline_mode<synchronous>, transform_indices = @transform_0, window_bounds = array<i64: 8, 1>}, {pipeline_mode = #tpu.pipeline_mode<synchronous>, transform_indices = @transform_1, window_bounds = array<i64: 8, 1>}, {pipeline_mode = #tpu.pipeline_mode<synchronous>, transform_indices = @transform_2, window_bounds = array<i64: 8, 1>}, {pipeline_mode = #tpu.pipeline_mode<synchronous>, transform_indices = @transform_3, window_bounds = array<i64: 8, 1>}, {transform_indices = @transform_4, window_bounds = array<i64: 4, 32, 32>}, {pipeline_mode = #tpu.pipeline_mode<synchronous>, transform_indices = @transform_5, window_bounds = array<i64: 8, 1>}, {transform_indices = @transform_6, window_bounds = array<i64: 1, 1>}]} {
    %c0_i32 = arith.constant 0 : i32
    %0 = arith.cmpi eq, %arg0, %c0_i32 : i32
    %1 = arith.extui %0 : i1 to i32
    %c0_i32_0 = arith.constant 0 : i32
    %2 = arith.cmpi ne, %1, %c0_i32_0 : i32
    scf.if %2 {
      %cst_23 = arith.constant 0.000000e+00 : f32
      %57 = vector.broadcast %cst_23 : f32 to vector<8x1xf32>
      %c0_24 = arith.constant 0 : index
      %c0_25 = arith.constant 0 : index
      %58 = vector.load %arg8[%c0_24, %c0_25] : memref<8x1xf32, #tpu.memory_space<vmem>>, vector<8x1xf32>
      tpu.vector_store %arg8[%c0_24, %c0_25], %57 {strides = array<i32>} : memref<8x1xf32, #tpu.memory_space<vmem>>, vector<8x1xf32>,
    } else {
    }
    %c0 = arith.constant 0 : index
    %c0_1 = arith.constant 0 : index
    %c0_2 = arith.constant 0 : index
    %3 = vector.load %arg5[%c0, %c0_1, %c0_2] : memref<4x32x32xf32, #tpu.memory_space<vmem>>, vector<4x32x32xf32>
    %cst = arith.constant dense<0xFF800000> : vector<32x32xf32>
    %4 = vector.multi_reduction <maximumf>, %3, %cst [0] : vector<4x32x32xf32> to vector<32x32xf32>
    %5 = vector.shape_cast %4 : vector<32x32xf32> to vector<1x32x32xf32>
    %6 = vector.broadcast %5 : vector<1x32x32xf32> to vector<4x32x32xf32>
    %7 = arith.subf %3, %6 : vector<4x32x32xf32>
    %8 = math.exp %7 : vector<4x32x32xf32>
    %cst_3 = arith.constant dense<0.000000e+00> : vector<32x32xf32>
    %9 = vector.multi_reduction <add>, %8, %cst_3 [0] : vector<4x32x32xf32> to vector<32x32xf32>
    %10 = tpu.reciprocal %9 {approx = true} : vector<32x32xf32> -> vector<32x32xf32>
    %11 = arith.mulf %9, %10 : vector<32x32xf32>
    %cst_4 = arith.constant 2.000000e+00 : f32
    %12 = vector.broadcast %cst_4 : f32 to vector<32x32xf32>
    %13 = arith.subf %12, %11 : vector<32x32xf32>
    %14 = arith.mulf %10, %13 : vector<32x32xf32>
    %15 = vector.extract_strided_slice %8 {offsets = [1, 0, 0], sizes = [1, 32, 32], strides = [1, 1, 1]} : vector<4x32x32xf32> to vector<1x32x32xf32>
    %16 = vector.shape_cast %15 : vector<1x32x32xf32> to vector<32x32xf32>
    %17 = arith.mulf %16, %14 : vector<32x32xf32>
    %c0_5 = arith.constant 0 : index
    %c0_6 = arith.constant 0 : index
    %18 = vector.load %arg1[%c0_5, %c0_6] : memref<8x1xi32, #tpu.memory_space<vmem>>, vector<8x1xi32>
    %c0_7 = arith.constant 0 : index
    %c0_8 = arith.constant 0 : index
    %19 = vector.load %arg2[%c0_7, %c0_8] : memref<8x1xi32, #tpu.memory_space<vmem>>, vector<8x1xi32>
    %c0_9 = arith.constant 0 : index
    %c0_10 = arith.constant 0 : index
    %20 = vector.load %arg3[%c0_9, %c0_10] : memref<8x1xi32, #tpu.memory_space<vmem>>, vector<8x1xi32>
    %c0_11 = arith.constant 0 : index
    %c0_12 = arith.constant 0 : index
    %21 = vector.load %arg4[%c0_11, %c0_12] : memref<8x1xi32, #tpu.memory_space<vmem>>, vector<8x1xi32>
    %c32_i32 = arith.constant 32 : i32
    %22 = arith.muli %arg0, %c32_i32 : i32
    %23 = tpu.iota {dimensions = array<i32: 1>} : vector<8x32xi32>
    %24 = vector.broadcast %22 : i32 to vector<8x32xi32>
    %25 = arith.addi %24, %23 : vector<8x32xi32>
    %26 = vector.broadcast %19 : vector<8x1xi32> to vector<8x32xi32>
    %27 = arith.cmpi sge, %25, %26 : vector<8x32xi32>
    %28 = vector.broadcast %21 : vector<8x1xi32> to vector<8x32xi32>
    %29 = arith.cmpi slt, %25, %28 : vector<8x32xi32>
    %30 = arith.andi %27, %29 : vector<8x32xi1>
    %31 = arith.extui %30 : vector<8x32xi1> to vector<8x32xi32>
    %32 = arith.sitofp %31 : vector<8x32xi32> to vector<8x32xf32>
    %33 = arith.truncf %32 : vector<8x32xf32> to vector<8x32xbf16>
    %34 = arith.truncf %17 : vector<32x32xf32> to vector<32x32xbf16>
    %35 = arith.extf %34 : vector<32x32xbf16> to vector<32x32xf32>
    %36 = arith.subf %17, %35 : vector<32x32xf32>
    %37 = arith.truncf %36 : vector<32x32xf32> to vector<32x32xbf16>
    %cst_13 = arith.constant dense<0.000000e+00> : vector<8x32xf32>
    %38 = tpu.matmul %33, %34, %cst_13 {dimension_numbers = #tpu.dot_dimension_numbers<[1], [0], [0], [1], [0, 0, 1, 1], [], []>} : vector<8x32xbf16>, vector<32x32xbf16>, vector<8x32xf32> -> vector<8x32xf32>
    %cst_14 = arith.constant dense<0.000000e+00> : vector<8x32xf32>
    %39 = tpu.matmul %33, %37, %cst_14 {dimension_numbers = #tpu.dot_dimension_numbers<[1], [0], [0], [1], [0, 0, 1, 1], [], []>} : vector<8x32xbf16>, vector<32x32xbf16>, vector<8x32xf32> -> vector<8x32xf32>
    %40 = arith.addf %38, %39 : vector<8x32xf32>
    %41 = tpu.iota {dimensions = array<i32: 1>} : vector<8x32xi32>
    %42 = vector.broadcast %18 : vector<8x1xi32> to vector<8x32xi32>
    %43 = arith.cmpi sge, %41, %42 : vector<8x32xi32>
    %44 = vector.broadcast %20 : vector<8x1xi32> to vector<8x32xi32>
    %45 = arith.cmpi slt, %41, %44 : vector<8x32xi32>
    %46 = arith.andi %43, %45 : vector<8x32xi1>
    %c0_15 = arith.constant 0 : index
    %c0_16 = arith.constant 0 : index
    %47 = vector.load %arg8[%c0_15, %c0_16] : memref<8x1xf32, #tpu.memory_space<vmem>>, vector<8x1xf32>
    %cst_17 = arith.constant 0.000000e+00 : f32
    %48 = vector.broadcast %cst_17 : f32 to vector<8x32xf32>
    %49 = arith.select %46, %40, %48 : vector<8x32xi1>, vector<8x32xf32>
    %cst_18 = arith.constant dense<0.000000e+00> : vector<8xf32>
    %50 = vector.multi_reduction <add>, %49, %cst_18 [1] : vector<8x32xf32> to vector<8xf32>
    %51 = vector.shape_cast %50 : vector<8xf32> to vector<8x1xf32>
    %52 = arith.addf %47, %51 : vector<8x1xf32>
    %c0_19 = arith.constant 0 : index
    %c0_20 = arith.constant 0 : index
    %53 = vector.load %arg8[%c0_19, %c0_20] : memref<8x1xf32, #tpu.memory_space<vmem>>, vector<8x1xf32>
    tpu.vector_store %arg8[%c0_19, %c0_20], %52 {strides = array<i32>} : memref<8x1xf32, #tpu.memory_space<vmem>>, vector<8x1xf32>,
    %c0_i32_21 = arith.constant 0 : i32
    %54 = arith.cmpi eq, %arg0, %c0_i32_21 : i32
    %55 = arith.extui %54 : i1 to i32
    %c0_i32_22 = arith.constant 0 : i32
    %56 = arith.cmpi ne, %55, %c0_i32_22 : i32
    scf.if %56 {
      %57 = arith.subi %20, %18 : vector<8x1xi32>
      %58 = arith.subi %21, %19 : vector<8x1xi32>
      %59 = arith.muli %57, %58 : vector<8x1xi32>
      %60 = arith.sitofp %59 : vector<8x1xi32> to vector<8x1xf32>
      %c0_23 = arith.constant 0 : index
      %c0_24 = arith.constant 0 : index
      %61 = vector.load %arg8[%c0_23, %c0_24] : memref<8x1xf32, #tpu.memory_space<vmem>>, vector<8x1xf32>
      %62 = arith.divf %61, %60 : vector<8x1xf32>
      %c0_25 = arith.constant 0 : index
      %c0_26 = arith.constant 0 : index
      %63 = vector.load %arg6[%c0_25, %c0_26] : memref<8x1xf32, #tpu.memory_space<vmem>>, vector<8x1xf32>
      %64 = tpu.transpose %62, [1, 0] : vector<8x1xf32> -> vector<1x8xf32>
      %65 = vector.broadcast %64 : vector<1x8xf32> to vector<8x8xf32>
      %66 = vector.broadcast %62 : vector<8x1xf32> to vector<8x8xf32>
      %67 = arith.subf %65, %66 : vector<8x8xf32>
      %68 = tpu.transpose %63, [1, 0] : vector<8x1xf32> -> vector<1x8xf32>
      %69 = vector.broadcast %68 : vector<1x8xf32> to vector<8x8xf32>
      %70 = vector.broadcast %63 : vector<8x1xf32> to vector<8x8xf32>
      %71 = arith.subf %69, %70 : vector<8x8xf32>
      %72 = arith.mulf %67, %67 : vector<8x8xf32>
      %cst_27 = arith.constant 1.000000e-10 : f32
      %73 = vector.broadcast %cst_27 : f32 to vector<8x8xf32>
      %74 = arith.addf %72, %73 : vector<8x8xf32>
      %75 = math.sqrt %74 : vector<8x8xf32>
      %76 = arith.mulf %71, %71 : vector<8x8xf32>
      %cst_28 = arith.constant 1.000000e-10 : f32
      %77 = vector.broadcast %cst_28 : f32 to vector<8x8xf32>
      %78 = arith.addf %76, %77 : vector<8x8xf32>
      %79 = math.sqrt %78 : vector<8x8xf32>
      %80 = arith.subf %75, %79 : vector<8x8xf32>
      %81 = arith.mulf %80, %80 : vector<8x8xf32>
      %82 = vector.shape_cast %81 : vector<8x8xf32> to vector<1x8x8xf32>
      %cst_29 = arith.constant dense<0.000000e+00> : vector<1xf32>
      %83 = vector.multi_reduction <add>, %82, %cst_29 [1, 2] : vector<1x8x8xf32> to vector<1xf32>
      %84 = vector.shape_cast %83 : vector<1xf32> to vector<1x1x1xf32>
      %85 = vector.extract %84[0, 0, 0] : f32 from vector<1x1x1xf32>
      %cst_30 = arith.constant 6.400000e+01 : f32
      %86 = arith.divf %85, %cst_30 : f32
      %c0_31 = arith.constant 0 : index
      %c0_32 = arith.constant 0 : index
      %87 = memref.load %arg7[%c0_31, %c0_32] : memref<1x1xf32, #tpu.memory_space<smem>>
      memref.store %86, %arg7[%c0_31, %c0_32] : memref<1x1xf32, #tpu.memory_space<smem>>
    } else {
    }
    return
  }
  func.func @transform_0(%arg0: i32) -> (i32, i32) {
    %c0_i32 = arith.constant 0 : i32
    %c0_i32_0 = arith.constant 0 : i32
    %c0_i32_1 = arith.constant 0 : i32
    return %c0_i32, %c0_i32_0 : i32, i32
  }
  func.func @transform_1(%arg0: i32) -> (i32, i32) {
    %c0_i32 = arith.constant 0 : i32
    %c0_i32_0 = arith.constant 0 : i32
    %c0_i32_1 = arith.constant 0 : i32
    return %c0_i32, %c0_i32_0 : i32, i32
  }
  func.func @transform_2(%arg0: i32) -> (i32, i32) {
    %c0_i32 = arith.constant 0 : i32
    %c0_i32_0 = arith.constant 0 : i32
    %c0_i32_1 = arith.constant 0 : i32
    return %c0_i32, %c0_i32_0 : i32, i32
  }
  func.func @transform_3(%arg0: i32) -> (i32, i32) {
    %c0_i32 = arith.constant 0 : i32
    %c0_i32_0 = arith.constant 0 : i32
    %c0_i32_1 = arith.constant 0 : i32
    return %c0_i32, %c0_i32_0 : i32, i32
  }
  func.func @transform_4(%arg0: i32) -> (i32, i32, i32) {
    %c0_i32 = arith.constant 0 : i32
    %c0_i32_0 = arith.constant 0 : i32
    %c0_i32_1 = arith.constant 0 : i32
    return %c0_i32, %arg0, %c0_i32_0 : i32, i32, i32
  }
  func.func @transform_5(%arg0: i32) -> (i32, i32) {
    %c0_i32 = arith.constant 0 : i32
    %c0_i32_0 = arith.constant 0 : i32
    %c0_i32_1 = arith.constant 0 : i32
    return %c0_i32, %c0_i32_0 : i32, i32
  }
  func.func @transform_6(%arg0: i32) -> (i32, i32) {
    %c0_i32 = arith.constant 0 : i32
    %c0_i32_0 = arith.constant 0 : i32
    %c0_i32_1 = arith.constant 0 : i32
    return %c0_i32, %c0_i32_0 : i32, i32
  }
}

</mosaic_0001>

<llo_original>
// kernel: tpu_custom_call.1
$region0: #{tpu_custom_call.1}
  #allocation0 [shape = 'u32[]', space=smem, size = 0x4, offset = 0x4, fixed_abs, tag = 'smem constant byte address 0x4 - core index']
  #allocation1 [shape = 'u32[144,128]{1,0:T(1,128)}', space=vmem, size = 0x12000, scoped, tag = 'internal scratch']
  #allocation2 [shape = 'f32[8,1]{1,0:T(8,128)}', space=vmem, size = 0x1000, scoped, tag = 'scratch operand']
  %s0 = inlined_call_operand.vmem [shape: s32[8,1], index: 0, kind: input, shape index: {}]
  %s1 = inlined_call_operand.vmem [shape: s32[8,1], index: 1, kind: input, shape index: {}]
  %s2 = inlined_call_operand.vmem [shape: s32[8,1], index: 2, kind: input, shape index: {}]
  %s3 = inlined_call_operand.vmem [shape: s32[8,1], index: 3, kind: input, shape index: {}]
  %s4 = inlined_call_operand.hbm [shape: f32[4,32,32], index: 4, kind: input, shape index: {}]
  %s5 = inlined_call_operand.vmem [shape: f32[8,1], index: 5, kind: input, shape index: {}]
  %s6 = inlined_call_operand.hbm [shape: f32[1,1], index: 6, kind: output, shape index: {}]
  %s7 = sld [smem:[#allocation0]]
  $region46: #{tpu_custom_call.1} parent=0
    _
  %s9 = ssub.s32 1, %s7
  %s10 = scalar_select 0, %s9, %s7
  $region1: #{tpu_custom_call.1} parent=0
    #allocation3 [shape = 'u8[65536]{0}', space=vmem, size = 0x10000, scoped, tag = 'input window, operand 4, single buffered']
    #allocation4 [shape = 's32[1]{0}', space=sflag, size = 0x4, scoped, tag = 'scoped memory for tpu_custom_call.1']
    #allocation5 [shape = 's32[1]{0}', space=sflag, size = 0x4, scoped, tag = 'scoped memory for tpu_custom_call.1']
    #allocation6 [shape = 'u8[512]{0}', space=smem, size = 0x200, scoped, tag = 'output window, operand 0, single buffered']
    %11 = vsyncpa [#allocation4], 0
    %12 = vsyncpa [#allocation5], 0
    // Predicated region
    $region2: #{tpu_custom_call.1} parent=1 // pred_check
      _
    $region3: #{tpu_custom_call.1} parent=1 // pred_check_branch
      %14 = sbr.rel (0) target = $region5
    $region4: #{tpu_custom_call.1} parent=1 // pred_region
      _
    $region5: #{tpu_custom_call.1} parent=1 // pred_fallthru
      _
    // Predicated region
    $region6: #{tpu_custom_call.1} parent=1 // pred_check
      _
    $region7: #{tpu_custom_call.1} parent=1 // pred_check_branch
      %16 = sbr.rel (0) target = $region9
    $region8: #{tpu_custom_call.1} parent=1 // pred_region
      _
    $region9: #{tpu_custom_call.1} parent=1 // pred_fallthru
      _
    // Predicated region
    $region10: #{tpu_custom_call.1} parent=1 // pred_check
      _
    $region11: #{tpu_custom_call.1} parent=1 // pred_check_branch
      %18 = sbr.rel (0) target = $region13
    $region12: #{tpu_custom_call.1} parent=1 // pred_region
      _
    $region13: #{tpu_custom_call.1} parent=1 // pred_fallthru
      _
    // Predicated region
    $region14: #{tpu_custom_call.1} parent=1 // pred_check
      _
    $region15: #{tpu_custom_call.1} parent=1 // pred_check_branch
      %20 = sbr.rel (0) target = $region17
    $region16: #{tpu_custom_call.1} parent=1 // pred_region
      _
    $region17: #{tpu_custom_call.1} parent=1 // pred_fallthru
      _
    // Predicated region
    $region18: #{tpu_custom_call.1} parent=1 // pred_check
      _
    $region19: #{tpu_custom_call.1} parent=1 // pred_check_branch
      %22 = sbr.rel (0) target = $region21
    $region20: #{tpu_custom_call.1} parent=1 // pred_region
      %s24 = ssub.s32 2048, 2048
      %25 = vsyncadd [#allocation4], %s24
      %s26 = sshll.u32 [#allocation3], 4
      %s27 = int_to_ptr.vmem [resolvable:$true] %s26
      %32 = dma.hbm_to_vmem [thread:$0]  %s4, 2048, %s27, [#allocation4], 128, 128, 8
    $region21: #{tpu_custom_call.1} parent=1 // pred_fallthru
      _
    // Predicated region
    $region22: #{tpu_custom_call.1} parent=1 // pred_check
      _
    $region23: #{tpu_custom_call.1} parent=1 // pred_check_branch
      %34 = sbr.rel (0) target = $region25
    $region24: #{tpu_custom_call.1} parent=1 // pred_region
      _
    $region25: #{tpu_custom_call.1} parent=1 // pred_fallthru
      _
    // Predicated region
    $region26: #{tpu_custom_call.1} parent=1 // pred_check
      _
    $region27: #{tpu_custom_call.1} parent=1 // pred_check_branch
      %36 = sbr.rel (0) target = $region29
    $region28: #{tpu_custom_call.1} parent=1 // pred_region
      %37 = dma.done [#allocation4], 2048
    $region29: #{tpu_custom_call.1} parent=1 // pred_fallthru
      _
    %p39 = scmp.eq.s32.totalorder 0, 0
    // Predicated region
    $region30: #{tpu_custom_call.1} parent=1 // pred_check
      %p40 = pneg %p39
    $region31: #{tpu_custom_call.1} parent=1 // pred_check_branch
      %42 = sbr.rel (%p40) target = $region33
    $region32: #{tpu_custom_call.1} parent=1 // pred_region
      %vm43 = vcmask 7168
      %44 = vst.msk [vmem:[#allocation2] sm:$0xff] %vm43, 0.0
    $region33: #{tpu_custom_call.1} parent=1 // pred_fallthru
      _
    %v45 = vld [vmem:[#allocation3] sm:$0xff]
    %v46 = vld [vmem:[#allocation3 + $0x8] sm:$0xff]
    %v47 = vld [vmem:[#allocation3 + $0x10] sm:$0xff]
    %v48 = vld [vmem:[#allocation3 + $0x18] sm:$0xff]
    %v49 = vld [vmem:[#allocation3 + $0x20] sm:$0xff]
    %v50 = vld [vmem:[#allocation3 + $0x28] sm:$0xff]
    %v51 = vld [vmem:[#allocation3 + $0x30] sm:$0xff]
    %v52 = vld [vmem:[#allocation3 + $0x38] sm:$0xff]
    %v53 = vld [vmem:[#allocation3 + $0x40] sm:$0xff]
    %v54 = vld [vmem:[#allocation3 + $0x48] sm:$0xff]
    %v55 = vld [vmem:[#allocation3 + $0x50] sm:$0xff]
    %v56 = vld [vmem:[#allocation3 + $0x58] sm:$0xff]
    %v57 = vld [vmem:[#allocation3 + $0x60] sm:$0xff]
    %v58 = vld [vmem:[#allocation3 + $0x68] sm:$0xff]
    %v59 = vld [vmem:[#allocation3 + $0x70] sm:$0xff]
    %v60 = vld [vmem:[#allocation3 + $0x78] sm:$0xff]
    %vm61 = vcmask 261120
    %v62 = vsel %vm61, %v45, -inf
    %v63 = vsel %vm61, %v49, -inf
    %v64 = vmax.f32 %v62, %v63
    %v65 = vsel %vm61, %v53, -inf
    %v66 = vmax.f32 %v64, %v65
    %v67 = vsel %vm61, %v57, -inf
    %v68 = vmax.f32 %v66, %v67
    %v69 = vsel %vm61, %v46, -inf
    %v70 = vsel %vm61, %v50, -inf
    %v71 = vmax.f32 %v69, %v70
    %v72 = vsel %vm61, %v54, -inf
    %v73 = vmax.f32 %v71, %v72
    %v74 = vsel %vm61, %v58, -inf
    %v75 = vmax.f32 %v73, %v74
    %v76 = vsel %vm61, %v47, -inf
    %v77 = vsel %vm61, %v51, -inf
    %v78 = vmax.f32 %v76, %v77
    %v79 = vsel %vm61, %v55, -inf
    %v80 = vmax.f32 %v78, %v79
    %v81 = vsel %vm61, %v59, -inf
    %v82 = vmax.f32 %v80, %v81
    %v83 = vsel %vm61, %v48, -inf
    %v84 = vsel %vm61, %v52, -inf
    %v85 = vmax.f32 %v83, %v84
    %v86 = vsel %vm61, %v56, -inf
    %v87 = vmax.f32 %v85, %v86
    %v88 = vsel %vm61, %v60, -inf
    %v89 = vmax.f32 %v87, %v88
    %v90 = vsub.f32 %v45, %v68
    %v91 = vsub.f32 %v46, %v75
    %v92 = vsub.f32 %v47, %v82
    %v93 = vsub.f32 %v48, %v89
    %v94 = vsub.f32 %v49, %v68
    %v95 = vsub.f32 %v50, %v75
    %v96 = vsub.f32 %v51, %v82
    %v97 = vsub.f32 %v52, %v89
    %v98 = vsub.f32 %v53, %v68
    %v99 = vsub.f32 %v54, %v75
    %v100 = vsub.f32 %v55, %v82
    %v101 = vsub.f32 %v56, %v89
    %v102 = vsub.f32 %v57, %v68
    %v103 = vsub.f32 %v58, %v75
    %v104 = vsub.f32 %v59, %v82
    %v105 = vsub.f32 %v60, %v89
    %v106 = vmul.f32 %v90, 1.442695
    %v107 = vpow.pop %v106
    %v108 = vmul.f32 %v91, 1.442695
    %v109 = vpow.pop %v108
    %v110 = vmul.f32 %v92, 1.442695
    %v111 = vpow.pop %v110
    %v112 = vmul.f32 %v93, 1.442695
    %v113 = vpow.pop %v112
    %v114 = vmul.f32 %v94, 1.442695
    %v115 = vpow.pop %v114
    %v116 = vmul.f32 %v95, 1.442695
    %v117 = vpow.pop %v116
    %v118 = vmul.f32 %v96, 1.442695
    %v119 = vpow.pop %v118
    %v120 = vmul.f32 %v97, 1.442695
    %v121 = vpow.pop %v120
    %v122 = vmul.f32 %v98, 1.442695
    %v123 = vpow.pop %v122
    %v124 = vmul.f32 %v99, 1.442695
    %v125 = vpow.pop %v124
    %v126 = vmul.f32 %v100, 1.442695
    %v127 = vpow.pop %v126
    %v128 = vmul.f32 %v101, 1.442695
    %v129 = vpow.pop %v128
    %v130 = vmul.f32 %v102, 1.442695
    %v131 = vpow.pop %v130
    %v132 = vmul.f32 %v103, 1.442695
    %v133 = vpow.pop %v132
    %v134 = vmul.f32 %v104, 1.442695
    %v135 = vpow.pop %v134
    %v136 = vmul.f32 %v105, 1.442695
    %v137 = vpow.pop %v136
    %v138 = vsel %vm61, %v107, 0.0
    %v139 = vsel %vm61, %v115, 0.0
    %v140 = vadd.f32 %v138, %v139
    %v141 = vsel %vm61, %v123, 0.0
    %v142 = vadd.f32 %v140, %v141
    %v143 = vsel %vm61, %v131, 0.0
    %v144 = vadd.f32 %v142, %v143
    %v145 = vsel %vm61, %v109, 0.0
    %v146 = vsel %vm61, %v117, 0.0
    %v147 = vadd.f32 %v145, %v146
    %v148 = vsel %vm61, %v125, 0.0
    %v149 = vadd.f32 %v147, %v148
    %v150 = vsel %vm61, %v133, 0.0
    %v151 = vadd.f32 %v149, %v150
    %v152 = vsel %vm61, %v111, 0.0
    %v153 = vsel %vm61, %v119, 0.0
    %v154 = vadd.f32 %v152, %v153
    %v155 = vsel %vm61, %v127, 0.0
    %v156 = vadd.f32 %v154, %v155
    %v157 = vsel %vm61, %v135, 0.0
    %v158 = vadd.f32 %v156, %v157
    %v159 = vsel %vm61, %v113, 0.0
    %v160 = vsel %vm61, %v121, 0.0
    %v161 = vadd.f32 %v159, %v160
    %v162 = vsel %vm61, %v129, 0.0
    %v163 = vadd.f32 %v161, %v162
    %v164 = vsel %vm61, %v137, 0.0
    %v165 = vadd.f32 %v163, %v164
    %v166 = vrcp.pop %v144
    %v167 = vrcp.pop %v151
    %v168 = vrcp.pop %v158
    %v169 = vrcp.pop %v165
    %v170 = vmul.f32 %v144, %v166
    %v171 = vmul.f32 %v151, %v167
    %v172 = vmul.f32 %v158, %v168
    %v173 = vmul.f32 %v165, %v169
    %v174 = vsub.f32 2.0, %v170
    %v175 = vsub.f32 2.0, %v171
    %v176 = vsub.f32 2.0, %v172
    %v177 = vsub.f32 2.0, %v173
    %v178 = vmul.f32 %v166, %v174
    %v179 = vmul.f32 %v167, %v175
    %v180 = vmul.f32 %v168, %v176
    %v181 = vmul.f32 %v169, %v177
    %v182 = vmul.f32 %v115, %v178
    %v183 = vmul.f32 %v117, %v179
    %v184 = vmul.f32 %v119, %v180
    %v185 = vmul.f32 %v121, %v181
    %v186 = vld [vmem:[%s0] sm:$0xff]
    %v187 = vld [vmem:[%s1] sm:$0xff]
    %v188 = vld [vmem:[%s2] sm:$0xff]
    %v189 = vld [vmem:[%s3] sm:$0xff]
    %s190 = smul.u32 0, 32
    %v191 = vlaneseq
    %v192 = vand.u32 %v191, 127
    %v193 = vstv %s190
    %v194 = vadd.s32 %v193, %v192
    %195 = vset.pattern.permute.xlu0 0
    %196 = vperm.xlu0 %195, %v187
    %v197 = vpop.permute.xlu0 %196
    %vm198 = vcmp.ge.s32.totalorder %v194, %v197
    %199 = vset.pattern.permute.xlu0 0
    %200 = vperm.xlu0 %199, %v189
    %v201 = vpop.permute.xlu0 %200
    %vm202 = vcmp.lt.s32.totalorder %v194, %v201
    %vm203 = vmand %vm198, %vm202
    %v204 = vsel %vm203, 1, 0
    %v205 = vcvt.s32.f32 %v204
    %v206 = vpack.c.bf16 %v205, %v205
    %v207 = vpack.c.bf16 %v183, %v182
    %v208 = vpack.c.bf16 %v185, %v184
    %v209 = vunpack.c.l.bf16 %v207
    %v210 = vunpack.c.h.bf16 %v207
    %v211 = vunpack.c.l.bf16 %v208
    %v212 = vunpack.c.h.bf16 %v208
    %v213 = vsub.f32 %v182, %v209
    %v214 = vsub.f32 %v183, %v210
    %v215 = vsub.f32 %v184, %v211
    %v216 = vsub.f32 %v185, %v212
    %v217 = vpack.c.bf16 %v214, %v213
    %v218 = vpack.c.bf16 %v216, %v215
    %v220 = vsel %vm61, %v206, 0
    %222 = vmatprep.subr.bf16.mxu0 0
    %223 = vmatpush1.bf16.msra.mxu0 %v217
    %224 = vmatprep.subr.bf16.mxu0 0
    %225 = vmatpush1.bf16.msra.mxu0 %v218
    %226 = vmatprep.subr.bf16.mxu0 0
    %227 = vmatpush1.bf16.msra.mxu0 0
    %228 = vmatprep.subr.bf16.mxu0 0
    %229 = vmatpush1.bf16.msra.mxu0 0
    %230 = vmatprep.subr.bf16.mxu0 0
    %231 = vmatpush1.bf16.msra.mxu0 0
    %232 = vmatprep.subr.bf16.mxu0 0
    %233 = vmatpush1.bf16.msra.mxu0 0
    %234 = vmatprep.subr.bf16.mxu0 0
    %235 = vmatpush1.bf16.msra.mxu0 0
    %236 = vmatprep.subr.bf16.mxu0 0
    %237 = vmatpush1.bf16.msra.mxu0 0
    %238 = vmatprep.subr.bf16.mxu0 0
    %239 = vmatpush1.bf16.msra.mxu0 0
    %240 = vmatprep.subr.bf16.mxu0 0
    %241 = vmatpush1.bf16.msra.mxu0 0
    %242 = vmatprep.subr.bf16.mxu0 0
    %243 = vmatpush1.bf16.msra.mxu0 0
    %244 = vmatprep.subr.bf16.mxu0 0
    %245 = vmatpush1.bf16.msra.mxu0 0
    %246 = vmatprep.subr.bf16.mxu0 0
    %247 = vmatpush1.bf16.msra.mxu0 0
    %248 = vmatprep.subr.bf16.mxu0 0
    %249 = vmatpush1.bf16.msra.mxu0 0
    %250 = vmatprep.subr.bf16.mxu0 0
    %251 = vmatpush1.bf16.msra.mxu0 0
    %252 = vmatprep.subr.bf16.mxu0 0
    %253 = vmatpush1.bf16.msra.mxu0 0
    %254 = vmatprep.mubr.bf16.mxu0 0
    %255 = vmatmul.mubr.bf16.gmra.mrb[0].mxu0 %v220
    %v256 = vpop.f32.mrb[0].mxu0
    %v257 = vadd.f32 0.0, %v256
    %v258 = vpop.f32.mrb[0].mxu0
    %v259 = vpop.f32.mrb[0].mxu0
    %v260 = vpop.f32.mrb[0].mxu0
    %261 = vdwg.mxu0
    %262 = vmatprep.subr.bf16.mxu0 0
    %263 = vmatpush1.bf16.msra.mxu0 %v207
    %264 = vmatprep.subr.bf16.mxu0 0
    %265 = vmatpush1.bf16.msra.mxu0 %v208
    %266 = vmatprep.subr.bf16.mxu0 0
    %267 = vmatpush1.bf16.msra.mxu0 0
    %268 = vmatprep.subr.bf16.mxu0 0
    %269 = vmatpush1.bf16.msra.mxu0 0
    %270 = vmatprep.subr.bf16.mxu0 0
    %271 = vmatpush1.bf16.msra.mxu0 0
    %272 = vmatprep.subr.bf16.mxu0 0
    %273 = vmatpush1.bf16.msra.mxu0 0
    %274 = vmatprep.subr.bf16.mxu0 0
    %275 = vmatpush1.bf16.msra.mxu0 0
    %276 = vmatprep.subr.bf16.mxu0 0
    %277 = vmatpush1.bf16.msra.mxu0 0
    %278 = vmatprep.subr.bf16.mxu0 0
    %279 = vmatpush1.bf16.msra.mxu0 0
    %280 = vmatprep.subr.bf16.mxu0 0
    %281 = vmatpush1.bf16.msra.mxu0 0
    %282 = vmatprep.subr.bf16.mxu0 0
    %283 = vmatpush1.bf16.msra.mxu0 0
    %284 = vmatprep.subr.bf16.mxu0 0
    %285 = vmatpush1.bf16.msra.mxu0 0
    %286 = vmatprep.subr.bf16.mxu0 0
    %287 = vmatpush1.bf16.msra.mxu0 0
    %288 = vmatprep.subr.bf16.mxu0 0
    %289 = vmatpush1.bf16.msra.mxu0 0
    %290 = vmatprep.subr.bf16.mxu0 0
    %291 = vmatpush1.bf16.msra.mxu0 0
    %292 = vmatprep.subr.bf16.mxu0 0
    %293 = vmatpush1.bf16.msra.mxu0 0
    %294 = vmatprep.mubr.bf16.mxu0 0
    %295 = vmatmul.mubr.bf16.gmra.mrb[0].mxu0 %v220
    %v296 = vpop.f32.mrb[0].mxu0
    %v297 = vadd.f32 %v257, %v296
    %v298 = vpop.f32.mrb[0].mxu0
    %v299 = vpop.f32.mrb[0].mxu0
    %v300 = vpop.f32.mrb[0].mxu0
    %301 = vdwg.mxu0
    %302 = vset.pattern.permute.xlu0 0
    %303 = vperm.xlu0 %302, %v186
    %v304 = vpop.permute.xlu0 %303
    %vm305 = vcmp.ge.s32.totalorder %v192, %v304
    %306 = vset.pattern.permute.xlu0 0
    %307 = vperm.xlu0 %306, %v188
    %v308 = vpop.permute.xlu0 %307
    %vm309 = vcmp.lt.s32.totalorder %v192, %v308
    %vm310 = vmand %vm305, %vm309
    %v311 = vld [vmem:[#allocation2] sm:$0xff]
    %v312 = vsel %vm310, %v297, 0.0
    %v313 = vsel %vm61, %v312, 0.0
    %314 = vadd.xlane.f32.xlu0 %v313
    %v315 = vpop.xlane.xlu0 %314
    %v316 = vadd.f32 %v311, %v315
    %vm317 = vcmask 7168
    %318 = vst.msk [vmem:[#allocation2] sm:$0xff] %vm317, %v316
    // Predicated region
    $region34: #{tpu_custom_call.1} parent=1 // pred_check
      %p319 = pneg %p39
    $region35: #{tpu_custom_call.1} parent=1 // pred_check_branch
      %321 = sbr.rel (%p319) target = $region37
    $region36: #{tpu_custom_call.1} parent=1 // pred_region
      %v322 = vsub.s32 %v188, %v186
      %v323 = vsub.s32 %v189, %v187
      %v324 = vmul.u32 %v322, %v323
      %v325 = vcvt.s32.f32 %v324
      %v326 = vld [vmem:[#allocation2] sm:$0xff]
      %v327 = vrcp.pop %v325
      %v328 = vmul.f32 %v326, %v327
      %v329 = vld [vmem:[%s5] sm:$0xff]
      %330 = vxpose.xlu0.b32.start [1/16] %v328, 128
      %331 = vxpose.xlu0.b32.cont [2/16] 0.0, 128
      %332 = vxpose.xlu0.b32.cont [3/16] 0.0, 128
      %333 = vxpose.xlu0.b32.cont [4/16] 0.0, 128
      %334 = vxpose.xlu0.b32.cont [5/16] 0.0, 128
      %335 = vxpose.xlu0.b32.cont [6/16] 0.0, 128
      %336 = vxpose.xlu0.b32.cont [7/16] 0.0, 128
      %337 = vxpose.xlu0.b32.cont [8/16] 0.0, 128
      %338 = vxpose.xlu0.b32.cont [9/16] 0.0, 128
      %339 = vxpose.xlu0.b32.cont [10/16] 0.0, 128
      %340 = vxpose.xlu0.b32.cont [11/16] 0.0, 128
      %341 = vxpose.xlu0.b32.cont [12/16] 0.0, 128
      %342 = vxpose.xlu0.b32.cont [13/16] 0.0, 128
      %343 = vxpose.xlu0.b32.cont [14/16] 0.0, 128
      %344 = vxpose.xlu0.b32.cont [15/16] 0.0, 128
      %345 = vxpose.xlu0.b32.end [16/16] 0.0, 128
      %v346 = vpop.trf.xlu0
      %v347 = vpop.trf.xlu0
      %v348 = vpop.trf.xlu0
      %v349 = vpop.trf.xlu0
      %v350 = vpop.trf.xlu0
      %v351 = vpop.trf.xlu0
      %v352 = vpop.trf.xlu0
      %v353 = vpop.trf.xlu0
      %v354 = vpop.trf.xlu0
      %v355 = vpop.trf.xlu0
      %v356 = vpop.trf.xlu0
      %v357 = vpop.trf.xlu0
      %v358 = vpop.trf.xlu0
      %v359 = vpop.trf.xlu0
      %v360 = vpop.trf.xlu0
      %v361 = vpop.trf.xlu0
      %v362 = vlaneseq
      %v363 = vshrl.u32 %v362, 7
      %v364 = vsub.s32 0, %v363
      %v365 = vrot.slane %v346, %v364
      %367 = vset.pattern.permute.xlu0 0
      %368 = vperm.xlu0 %367, %v328
      %v369 = vpop.permute.xlu0 %368
      %v371 = vsub.f32 %v365, %v369
      %372 = vxpose.xlu0.b32.start [1/16] %v329, 128
      %373 = vxpose.xlu0.b32.cont [2/16] 0.0, 128
      %374 = vxpose.xlu0.b32.cont [3/16] 0.0, 128
      %375 = vxpose.xlu0.b32.cont [4/16] 0.0, 128
      %376 = vxpose.xlu0.b32.cont [5/16] 0.0, 128
      %377 = vxpose.xlu0.b32.cont [6/16] 0.0, 128
      %378 = vxpose.xlu0.b32.cont [7/16] 0.0, 128
      %379 = vxpose.xlu0.b32.cont [8/16] 0.0, 128
      %380 = vxpose.xlu0.b32.cont [9/16] 0.0, 128
      %381 = vxpose.xlu0.b32.cont [10/16] 0.0, 128
      %382 = vxpose.xlu0.b32.cont [11/16] 0.0, 128
      %383 = vxpose.xlu0.b32.cont [12/16] 0.0, 128
      %384 = vxpose.xlu0.b32.cont [13/16] 0.0, 128
      %385 = vxpose.xlu0.b32.cont [14/16] 0.0, 128
      %386 = vxpose.xlu0.b32.cont [15/16] 0.0, 128
      %387 = vxpose.xlu0.b32.end [16/16] 0.0, 128
      %v388 = vpop.trf.xlu0
      %v389 = vpop.trf.xlu0
      %v390 = vpop.trf.xlu0
      %v391 = vpop.trf.xlu0
      %v392 = vpop.trf.xlu0
      %v393 = vpop.trf.xlu0
      %v394 = vpop.trf.xlu0
      %v395 = vpop.trf.xlu0
      %v396 = vpop.trf.xlu0
      %v397 = vpop.trf.xlu0
      %v398 = vpop.trf.xlu0
      %v399 = vpop.trf.xlu0
      %v400 = vpop.trf.xlu0
      %v401 = vpop.trf.xlu0
      %v402 = vpop.trf.xlu0
      %v403 = vpop.trf.xlu0
      %v404 = vlaneseq
      %v405 = vshrl.u32 %v404, 7
      %v406 = vsub.s32 0, %v405
      %v407 = vrot.slane %v388, %v406
      %409 = vset.pattern.permute.xlu0 0
      %410 = vperm.xlu0 %409, %v329
      %v411 = vpop.permute.xlu0 %410
      %v413 = vsub.f32 %v407, %v411
      %v414 = vmul.f32 %v371, %v371
      %v415 = vadd.f32 %v414, 1e-10
      %v416 = vrsqrt.pop %v415
      %v417 = vmul.f32 %v415, %v416
      %vm418 = vcmp.eq.f32.partialorder %v415, inf
      %v419 = vsel %vm418, %v415, %v417
      %vm420 = vcmp.eq.f32.partialorder %v415, 0.0
      %v421 = vand.u32 %v415, 2147483648
      %v422 = vsel %vm420, %v421, %v419
      %v423 = vmul.f32 %v413, %v413
      %v424 = vadd.f32 %v423, 1e-10
      %v425 = vrsqrt.pop %v424
      %v426 = vmul.f32 %v424, %v425
      %vm427 = vcmp.eq.f32.partialorder %v424, inf
      %v428 = vsel %vm427, %v424, %v426
      %vm429 = vcmp.eq.f32.partialorder %v424, 0.0
      %v430 = vand.u32 %v424, 2147483648
      %v431 = vsel %vm429, %v430, %v428
      %v432 = vsub.f32 %v422, %v431
      %v433 = vmul.f32 %v432, %v432
      %vm434 = vcmask 64512
      %v435 = vsel %vm434, %v433, 0.0
      %436 = vadd.xlane.f32.xlu0 %v435
      %v437 = vpop.xlane.xlu0 %436
      %v438 = vrot.slane %v437, 4
      %v439 = vadd.f32 %v437, %v438
      %v440 = vrot.slane %v439, 2
      %v441 = vadd.f32 %v439, %v440
      %v442 = vrot.slane %v441, 1
      %v443 = vadd.f32 %v441, %v442
      %s444 = vtos %v443
      %v445 = vrcp.pop 64.0
      %s446 = vtos %v445
      %s447 = smul.f32 %s444, %s446
      %s448 = scalar_lea.smem [#allocation6], 0
      %449 = sst [smem:[%s448]] %s447
    $region37: #{tpu_custom_call.1} parent=1 // pred_fallthru
      _
    // Predicated region
    $region38: #{tpu_custom_call.1} parent=1 // pred_check
      _
    $region39: #{tpu_custom_call.1} parent=1 // pred_check_branch
      %451 = sbr.rel (0) target = $region41
    $region40: #{tpu_custom_call.1} parent=1 // pred_region
      %s453 = ssub.s32 16, 16
      %454 = vsyncadd [#allocation5], %s453
      %457 = dma.smem_to_hbm [#allocation6], 16, %s6, [#allocation5]
    $region41: #{tpu_custom_call.1} parent=1 // pred_fallthru
      _
    // Predicated region
    $region42: #{tpu_custom_call.1} parent=1 // pred_check
      _
    $region43: #{tpu_custom_call.1} parent=1 // pred_check_branch
      %459 = sbr.rel (0) target = $region45
    $region44: #{tpu_custom_call.1} parent=1 // pred_region
      %460 = dma.done [#allocation5], 16
    $region45: #{tpu_custom_call.1} parent=1 // pred_fallthru
      _
    %461 = sfence
    %462 = vsyncpa [#allocation4], 1
    %463 = vsyncpa [#allocation5], 1

</llo_original>
